<compile_context>
chip_gen: v6e
topology: v6e:2x2x1
jax: 0.10.0
libtpu: 0.0.40
codegen_flags: <defaults>
</compile_context>

<pallas_src>
import functools

import jax
import jax.numpy as jnp
from jax.experimental import pallas as pl
from jax.experimental.pallas import tpu as pltpu

IN_DIM = 64
HID_DIM = 128
OUT_DIM = 10
OUT_PAD = 128  # lane-dense padded output width


def _round_up(x, m):
    return ((x + m - 1) // m) * m


def mlp_kernel(x_ref, w1_ref, b1_ref, w2_ref, b2_ref, o_ref):
    # In-kernel bf16 cast of the activation tile (x stays f32 in HBM).
    x = x_ref[...].astype(jnp.bfloat16)
    # fc1 (bf16 operands, f32 accumulation) + bias + ReLU in f32
    h = jnp.dot(x, w1_ref[...], preferred_element_type=jnp.float32)
    h = jnp.maximum(h + b1_ref[...], 0.0)
    # fc2 on the zero-padded (128,128) bf16 weight tile
    y = jnp.dot(h.astype(jnp.bfloat16), w2_ref[...],
                preferred_element_type=jnp.float32)
    y = y + b2_ref[...]
    o_ref[...] = y.astype(o_ref.dtype)  # bf16 lane-dense store


def prepare_params(w1, b1, w2, b2):
    """One-time conversion to kernel layout (hoisted out of the per-call path):
    bf16 weights, W2/b2 zero-padded to 128 lanes, biases as (1, lanes) f32."""
    w1_b = w1.astype(jnp.bfloat16)
    b1_f = b1.reshape(1, HID_DIM).astype(jnp.float32)
    w2_p = jnp.zeros((HID_DIM, OUT_PAD), jnp.bfloat16)
    w2_p = w2_p.at[:, :OUT_DIM].set(w2.astype(jnp.bfloat16))
    b2_p = jnp.zeros((1, OUT_PAD), jnp.float32)
    b2_p = b2_p.at[:, :OUT_DIM].set(b2.reshape(1, OUT_DIM).astype(jnp.float32))
    return w1_b, b1_f, w2_p, b2_p


@functools.partial(jax.jit, static_argnames=("tile_b",))
def simple_nn_forward(x, w1_b, b1_f, w2_p, b2_p, *, tile_b=2048):
    """x: (B, 64) f32; params from prepare_params(). Returns (B, 10) f32."""
    B = x.shape[0]
    B8 = _round_up(B, 8)

    # Batch tile: multiple of 8, capped at tile_b.
    TB = _round_up(min(tile_b, B8), 8)
    # Force >=2 grid steps when the batch allows it, so the "parallel" grid
    # axis can shard across v7x's two TensorCores (harmless on v5e/v6e).
    if B8 // TB < 2 and B8 >= 16:
        TB = _round_up(-(-B8 // 2), 8)
    B_pad = _round_up(B8, TB)

    x_p = x if B_pad == B else jnp.pad(x, ((0, B_pad - B), (0, 0)))

    grid = (B_pad // TB,)

    cost = pl.CostEstimate(
        flops=2 * B_pad * (IN_DIM * HID_DIM + HID_DIM * OUT_PAD),
        transcendentals=0,
        bytes_accessed=(x_p.size * 4          # x read (f32)
                        + w1_b.size * 2 + b1_f.size * 4
                        + w2_p.size * 2 + b2_p.size * 4
                        + B_pad * OUT_PAD * 2  # bf16 output write
                        ),
    )

    out = pl.pallas_call(
        mlp_kernel,
        out_shape=jax.ShapeDtypeStruct((B_pad, OUT_PAD), jnp.bfloat16),
        grid=grid,
        in_specs=[
            pl.BlockSpec((TB, IN_DIM), lambda i: (i, 0)),        # x tile (f32)
            pl.BlockSpec((IN_DIM, HID_DIM), lambda i: (0, 0)),   # W1 (resident)
            pl.BlockSpec((1, HID_DIM), lambda i: (0, 0)),        # b1 (resident)
            pl.BlockSpec((HID_DIM, OUT_PAD), lambda i: (0, 0)),  # W2 padded
            pl.BlockSpec((1, OUT_PAD), lambda i: (0, 0)),        # b2 padded
        ],
        out_specs=pl.BlockSpec((TB, OUT_PAD), lambda i: (i, 0)),
        compiler_params=pltpu.CompilerParams(
            dimension_semantics=("parallel",),
        ),
        cost_estimate=cost,
    )(x_p, w1_b, b1_f, w2_p, b2_p)

    # Drop batch padding and zero lanes; padded rows hold relu(b1)@W2+b2 and
    # must stay masked off. Cheap now: bf16 read, tiny (B,10) f32 write.
    return out[:B, :OUT_DIM].astype(jnp.float32)


def init_params(key):
    # Deterministic init mimicking PyTorch's default Linear init:
    # U(-1/sqrt(fan_in), 1/sqrt(fan_in)) for both weight and bias.
    k1, k2, k3, k4 = jax.random.split(key, 4)
    bound1 = 1.0 / jnp.sqrt(IN_DIM)
    bound2 = 1.0 / jnp.sqrt(HID_DIM)
    w1 = jax.random.uniform(k1, (IN_DIM, HID_DIM), jnp.float32, -bound1, bound1)
    b1 = jax.random.uniform(k2, (1, HID_DIM), jnp.float32, -bound1, bound1)
    w2 = jax.random.uniform(k3, (HID_DIM, OUT_DIM), jnp.float32, -bound2, bound2)
    b2 = jax.random.uniform(k4, (1, OUT_DIM), jnp.float32, -bound2, bound2)
    return w1, b1, w2, b2


def _reference(x, w1, b1, w2, b2):
    return jnp.maximum(x @ w1 + b1, 0.0) @ w2 + b2


if __name__ == "__main__":
    key = jax.random.PRNGKey(0)
    kx, kp = jax.random.split(key)
    w1, b1, w2, b2 = init_params(kp)
    params = prepare_params(w1, b1, w2, b2)  # hoisted one-time prep

    # Small batch (single grid point, batch already a multiple of 8).
    B = 8
    x = jax.random.normal(kx, (B, IN_DIM), jnp.float32)
    out = simple_nn_forward(x, *params)
    jax.block_until_ready(out)
    ref = _reference(x, w1, b1, w2, b2)
    assert out.shape == (B, OUT_DIM)
    assert jnp.allclose(out, ref, atol=5e-2, rtol=5e-2), "small-batch mismatch"

    # Exercise the multi-tile grid + batch-padding path with a small tile.
    B2 = 200
    x2 = jax.random.normal(jax.random.PRNGKey(1), (B2, IN_DIM), jnp.float32)
    out2 = simple_nn_forward(x2, *params, tile_b=64)  # grid = 4 tiles
    jax.block_until_ready(out2)
    ref2 = _reference(x2, w1, b1, w2, b2)
    assert out2.shape == (B2, OUT_DIM)
    assert jnp.allclose(out2, ref2, atol=5e-2, rtol=5e-2), "multi-tile mismatch"

    # Exercise the forced >=2-step path (large batch, default tile_b).
    B3 = 1024
    x3 = jax.random.normal(jax.random.PRNGKey(2), (B3, IN_DIM), jnp.float32)
    out3 = simple_nn_forward(x3, *params)
    jax.block_until_ready(out3)
    ref3 = _reference(x3, w1, b1, w2, b2)
    assert out3.shape == (B3, OUT_DIM)
    assert jnp.allclose(out3, ref3, atol=5e-2, rtol=5e-2), "large-batch mismatch"

    print("KERNEL_OK")
</pallas_src>

<mosaic_0001>
module attributes {stable_mosaic.version = 11 : i64} {
  func.func @mlp_kernel(%arg0: i32, %arg1: memref<8x64xf32, #tpu.memory_space<vmem>>, %arg2: memref<64x128xbf16, #tpu.memory_space<vmem>>, %arg3: memref<1x128xf32, #tpu.memory_space<vmem>>, %arg4: memref<128x128xbf16, #tpu.memory_space<vmem>>, %arg5: memref<1x128xf32, #tpu.memory_space<vmem>>, %arg6: memref<8x128xbf16, #tpu.memory_space<vmem>>) attributes {dimension_semantics = [#tpu.dimension_semantics<parallel>], iteration_bounds = array<i64: 1>, scalar_prefetch = 0 : i64, scratch_operands = 0 : i64, tpu.core_type = #tpu.core_type<tc>, window_params = [{transform_indices = @transform_0, window_bounds = array<i64: 8, 64>}, {pipeline_mode = #tpu.pipeline_mode<synchronous>, transform_indices = @transform_1, window_bounds = array<i64: 64, 128>}, {pipeline_mode = #tpu.pipeline_mode<synchronous>, transform_indices = @transform_2, window_bounds = array<i64: 1, 128>}, {pipeline_mode = #tpu.pipeline_mode<synchronous>, transform_indices = @transform_3, window_bounds = array<i64: 128, 128>}, {pipeline_mode = #tpu.pipeline_mode<synchronous>, transform_indices = @transform_4, window_bounds = array<i64: 1, 128>}, {transform_indices = @transform_5, window_bounds = array<i64: 8, 128>}]} {
    %c0 = arith.constant 0 : index
    %c0_0 = arith.constant 0 : index
    %0 = vector.load %arg1[%c0, %c0_0] : memref<8x64xf32, #tpu.memory_space<vmem>>, vector<8x64xf32>
    %1 = arith.truncf %0 : vector<8x64xf32> to vector<8x64xbf16>
    %c0_1 = arith.constant 0 : index
    %c0_2 = arith.constant 0 : index
    %2 = vector.load %arg2[%c0_1, %c0_2] : memref<64x128xbf16, #tpu.memory_space<vmem>>, vector<64x128xbf16>
    %cst = arith.constant dense<0.000000e+00> : vector<8x128xf32>
    %3 = tpu.matmul %1, %2, %cst {dimension_numbers = #tpu.dot_dimension_numbers<[1], [0], [0], [1], [0, 0, 1, 1], [], []>} : vector<8x64xbf16>, vector<64x128xbf16>, vector<8x128xf32> -> vector<8x128xf32>
    %c0_3 = arith.constant 0 : index
    %c0_4 = arith.constant 0 : index
    %4 = vector.load %arg3[%c0_3, %c0_4] : memref<1x128xf32, #tpu.memory_space<vmem>>, vector<1x128xf32>
    %5 = vector.broadcast %4 : vector<1x128xf32> to vector<8x128xf32>
    %6 = arith.addf %3, %5 : vector<8x128xf32>
    %cst_5 = arith.constant 0.000000e+00 : f32
    %7 = vector.broadcast %cst_5 : f32 to vector<8x128xf32>
    %8 = arith.maximumf %6, %7 : vector<8x128xf32>
    %9 = arith.truncf %8 : vector<8x128xf32> to vector<8x128xbf16>
    %c0_6 = arith.constant 0 : index
    %c0_7 = arith.constant 0 : index
    %10 = vector.load %arg4[%c0_6, %c0_7] : memref<128x128xbf16, #tpu.memory_space<vmem>>, vector<128x128xbf16>
    %cst_8 = arith.constant dense<0.000000e+00> : vector<8x128xf32>
    %11 = tpu.matmul %9, %10, %cst_8 {dimension_numbers = #tpu.dot_dimension_numbers<[1], [0], [0], [1], [0, 0, 1, 1], [], []>} : vector<8x128xbf16>, vector<128x128xbf16>, vector<8x128xf32> -> vector<8x128xf32>
    %c0_9 = arith.constant 0 : index
    %c0_10 = arith.constant 0 : index
    %12 = vector.load %arg5[%c0_9, %c0_10] : memref<1x128xf32, #tpu.memory_space<vmem>>, vector<1x128xf32>
    %13 = vector.broadcast %12 : vector<1x128xf32> to vector<8x128xf32>
    %14 = arith.addf %11, %13 : vector<8x128xf32>
    %15 = arith.truncf %14 : vector<8x128xf32> to vector<8x128xbf16>
    %c0_11 = arith.constant 0 : index
    %c0_12 = arith.constant 0 : index
    %16 = vector.load %arg6[%c0_11, %c0_12] : memref<8x128xbf16, #tpu.memory_space<vmem>>, vector<8x128xbf16>
    tpu.vector_store %arg6[%c0_11, %c0_12], %15 {strides = array<i32>} : memref<8x128xbf16, #tpu.memory_space<vmem>>, vector<8x128xbf16>,
    return
  }
  func.func @transform_0(%arg0: i32) -> (i32, i32) {
    %c0_i32 = arith.constant 0 : i32
    %c0_i32_0 = arith.constant 0 : i32
    return %arg0, %c0_i32 : i32, i32
  }
  func.func @transform_1(%arg0: i32) -> (i32, i32) {
    %c0_i32 = arith.constant 0 : i32
    %c0_i32_0 = arith.constant 0 : i32
    %c0_i32_1 = arith.constant 0 : i32
    return %c0_i32, %c0_i32_0 : i32, i32
  }
  func.func @transform_2(%arg0: i32) -> (i32, i32) {
    %c0_i32 = arith.constant 0 : i32
    %c0_i32_0 = arith.constant 0 : i32
    %c0_i32_1 = arith.constant 0 : i32
    return %c0_i32, %c0_i32_0 : i32, i32
  }
  func.func @transform_3(%arg0: i32) -> (i32, i32) {
    %c0_i32 = arith.constant 0 : i32
    %c0_i32_0 = arith.constant 0 : i32
    %c0_i32_1 = arith.constant 0 : i32
    return %c0_i32, %c0_i32_0 : i32, i32
  }
  func.func @transform_4(%arg0: i32) -> (i32, i32) {
    %c0_i32 = arith.constant 0 : i32
    %c0_i32_0 = arith.constant 0 : i32
    %c0_i32_1 = arith.constant 0 : i32
    return %c0_i32, %c0_i32_0 : i32, i32
  }
  func.func @transform_5(%arg0: i32) -> (i32, i32) {
    %c0_i32 = arith.constant 0 : i32
    %c0_i32_0 = arith.constant 0 : i32
    return %arg0, %c0_i32 : i32, i32
  }
}

</mosaic_0001>

<llo_original>
// kernel: simple_nn_forward.1
$region0: #{simple_nn_forward.1}
  #allocation0 [shape = 'u32[]', space=smem, size = 0x4, offset = 0x4, fixed_abs, tag = 'smem constant byte address 0x4 - core index']
  #allocation1 [shape = 'u32[144,128]{1,0:T(1,128)}', space=vmem, size = 0x12000, scoped, tag = 'internal scratch']
  %s0 = inlined_call_operand.hbm [shape: f32[8,64], index: 0, kind: input, shape index: {}]
  %s1 = inlined_call_operand.hbm [shape: bf16[64,128], index: 1, kind: input, shape index: {}]
  %s2 = inlined_call_operand.vmem [shape: f32[1,128], index: 2, kind: input, shape index: {}]
  %s3 = inlined_call_operand.hbm [shape: bf16[128,128], index: 3, kind: input, shape index: {}]
  %s4 = inlined_call_operand.vmem [shape: f32[1,128], index: 4, kind: input, shape index: {}]
  %s5 = inlined_call_operand.vmem [shape: bf16[8,128], index: 5, kind: output, shape index: {}]
  %s6 = sld [smem:[#allocation0]]
  $region42: #{simple_nn_forward.1} parent=0
    _
  %s8 = ssub.s32 1, %s6
  %s9 = scalar_select 0, %s8, %s6
  $region1: #{simple_nn_forward.1} parent=0
    #allocation2 [shape = 'u8[4096]{0}', space=vmem, size = 0x1000, scoped, tag = 'input window, operand 0, single buffered']
    #allocation3 [shape = 's32[1]{0}', space=sflag, size = 0x4, scoped, tag = 'scoped memory for simple_nn_forward.1']
    #allocation4 [shape = 'u8[16384]{0}', space=vmem, size = 0x4000, scoped, tag = 'input window, operand 1, single buffered']
    #allocation5 [shape = 's32[1]{0}', space=sflag, size = 0x4, scoped, tag = 'scoped memory for simple_nn_forward.1']
    #allocation6 [shape = 'u8[32768]{0}', space=vmem, size = 0x8000, scoped, tag = 'input window, operand 3, single buffered']
    %10 = vsyncpa [#allocation3], 0
    %11 = vsyncpa [#allocation5], 0
    // Predicated region
    $region2: #{simple_nn_forward.1} parent=1 // pred_check
      _
    $region3: #{simple_nn_forward.1} parent=1 // pred_check_branch
      %13 = sbr.rel (0) target = $region5
    $region4: #{simple_nn_forward.1} parent=1 // pred_region
      %s15 = ssub.s32 128, 128
      %16 = vsyncadd [#allocation3], %s15
      %s18 = sshll.u32 [#allocation2], 4
      %s19 = int_to_ptr.vmem [resolvable:$true] %s18
      %21 = dma.hbm_to_vmem [thread:$0]  %s0, 128, %s19, [#allocation3]
    $region5: #{simple_nn_forward.1} parent=1 // pred_fallthru
      _
    // Predicated region
    $region6: #{simple_nn_forward.1} parent=1 // pred_check
      _
    $region7: #{simple_nn_forward.1} parent=1 // pred_check_branch
      %23 = sbr.rel (0) target = $region9
    $region8: #{simple_nn_forward.1} parent=1 // pred_region
      %s25 = ssub.s32 512, 512
      %26 = vsyncadd [#allocation5], %s25
      %s27 = sshll.u32 [#allocation4], 4
      %s28 = int_to_ptr.vmem [resolvable:$true] %s27
      %33 = dma.hbm_to_vmem [thread:$0]  %s1, 512, %s28, [#allocation5], 64, 64, 4
    $region9: #{simple_nn_forward.1} parent=1 // pred_fallthru
      _
    // Predicated region
    $region10: #{simple_nn_forward.1} parent=1 // pred_check
      _
    $region11: #{simple_nn_forward.1} parent=1 // pred_check_branch
      %35 = sbr.rel (0) target = $region13
    $region12: #{simple_nn_forward.1} parent=1 // pred_region
      _
    $region13: #{simple_nn_forward.1} parent=1 // pred_fallthru
      _
    // Predicated region
    $region14: #{simple_nn_forward.1} parent=1 // pred_check
      _
    $region15: #{simple_nn_forward.1} parent=1 // pred_check_branch
      %37 = sbr.rel (0) target = $region17
    $region16: #{simple_nn_forward.1} parent=1 // pred_region
      %s39 = ssub.s32 1024, 1024
      %40 = vsyncadd [#allocation5], %s39
      %s41 = sshll.u32 [#allocation6], 4
      %s42 = int_to_ptr.vmem [resolvable:$true] %s41
      %47 = dma.hbm_to_vmem [thread:$0]  %s3, 1024, %s42, [#allocation5], 64, 64, 4
    $region17: #{simple_nn_forward.1} parent=1 // pred_fallthru
      _
    // Predicated region
    $region18: #{simple_nn_forward.1} parent=1 // pred_check
      _
    $region19: #{simple_nn_forward.1} parent=1 // pred_check_branch
      %49 = sbr.rel (0) target = $region21
    $region20: #{simple_nn_forward.1} parent=1 // pred_region
      _
    $region21: #{simple_nn_forward.1} parent=1 // pred_fallthru
      _
    // Predicated region
    $region22: #{simple_nn_forward.1} parent=1 // pred_check
      _
    $region23: #{simple_nn_forward.1} parent=1 // pred_check_branch
      %51 = sbr.rel (0) target = $region25
    $region24: #{simple_nn_forward.1} parent=1 // pred_region
      %52 = dma.done [#allocation3], 128
    $region25: #{simple_nn_forward.1} parent=1 // pred_fallthru
      _
    // Predicated region
    $region26: #{simple_nn_forward.1} parent=1 // pred_check
      _
    $region27: #{simple_nn_forward.1} parent=1 // pred_check_branch
      %54 = sbr.rel (0) target = $region29
    $region28: #{simple_nn_forward.1} parent=1 // pred_region
      %55 = dma.done [#allocation5], 512
    $region29: #{simple_nn_forward.1} parent=1 // pred_fallthru
      _
    // Predicated region
    $region30: #{simple_nn_forward.1} parent=1 // pred_check
      _
    $region31: #{simple_nn_forward.1} parent=1 // pred_check_branch
      %57 = sbr.rel (0) target = $region33
    $region32: #{simple_nn_forward.1} parent=1 // pred_region
      %58 = dma.done [#allocation5], 1024
    $region33: #{simple_nn_forward.1} parent=1 // pred_fallthru
      _
    %v60 = vld [vmem:[#allocation2] sm:$0xff]
    %v61 = vpack.c.bf16 %v60, %v60
    %v62 = vld [vmem:[#allocation4] sm:$0xf]
    %v63 = vld [vmem:[#allocation4 + $0x4] sm:$0xf]
    %v64 = vld [vmem:[#allocation4 + $0x8] sm:$0xf]
    %v65 = vld [vmem:[#allocation4 + $0xc] sm:$0xf]
    %v66 = vld [vmem:[#allocation4 + $0x10] sm:$0xf]
    %v67 = vld [vmem:[#allocation4 + $0x14] sm:$0xf]
    %v68 = vld [vmem:[#allocation4 + $0x18] sm:$0xf]
    %v69 = vld [vmem:[#allocation4 + $0x1c] sm:$0xf]
    %v70 = vld [vmem:[%s2] sm:$0x1]
    %v72 = vlaneseq
    %v73 = vshrl.u32 %v72, 7
    %v74 = vsub.s32 0, %v73
    %v75 = vrot.slane %v70, %v74
    %v85 = vunpack.c.l.b16 %v62
    %v86 = vunpack.c.l.b16 %v63
    %v87 = vunpack.c.l.b16 %v64
    %v88 = vunpack.c.l.b16 %v65
    %v89 = vunpack.c.l.b16 %v66
    %v90 = vunpack.c.l.b16 %v67
    %v91 = vunpack.c.l.b16 %v68
    %v92 = vunpack.c.l.b16 %v69
    %v93 = vpack.c.b16 %v86, %v85
    %v94 = vpack.c.b16 %v88, %v87
    %v95 = vpack.c.b16 %v90, %v89
    %v96 = vpack.c.b16 %v92, %v91
    %vm101 = vcmask 523264
    %v103 = vsel %vm101, %v61, 0
    %105 = vmatprep.subr.bf16.mxu0 0
    %106 = vmatpush1.bf16.msra.mxu0 0
    %107 = vmatprep.subr.bf16.mxu0 0
    %108 = vmatpush1.bf16.msra.mxu0 0
    %109 = vmatprep.subr.bf16.mxu0 0
    %110 = vmatpush1.bf16.msra.mxu0 0
    %111 = vmatprep.subr.bf16.mxu0 0
    %112 = vmatpush1.bf16.msra.mxu0 0
    %113 = vmatprep.subr.bf16.mxu0 0
    %114 = vmatpush1.bf16.msra.mxu0 %v96
    %115 = vmatprep.subr.bf16.mxu0 0
    %116 = vmatpush1.bf16.msra.mxu0 %v95
    %117 = vmatprep.subr.bf16.mxu0 0
    %118 = vmatpush1.bf16.msra.mxu0 %v94
    %119 = vmatprep.subr.bf16.mxu0 0
    %120 = vmatpush1.bf16.msra.mxu0 %v93
    %121 = vmatprep.subr.bf16.mxu0 0
    %122 = vmatpush2.bf16.msra.mxu0 0
    %123 = vmatprep.subr.bf16.mxu0 0
    %124 = vmatpush2.bf16.msra.mxu0 0
    %125 = vmatprep.subr.bf16.mxu0 0
    %126 = vmatpush2.bf16.msra.mxu0 0
    %127 = vmatprep.subr.bf16.mxu0 0
    %128 = vmatpush2.bf16.msra.mxu0 0
    %129 = vmatprep.subr.bf16.mxu0 0
    %130 = vmatpush2.bf16.msra.mxu0 0
    %131 = vmatprep.subr.bf16.mxu0 0
    %132 = vmatpush2.bf16.msra.mxu0 0
    %133 = vmatprep.subr.bf16.mxu0 0
    %134 = vmatpush2.bf16.msra.mxu0 0
    %135 = vmatprep.subr.bf16.mxu0 0
    %136 = vmatpush2.bf16.msra.mxu0 0
    %137 = vmatprep.mubr.bf16.mxu0 0
    %138 = vmatmul.mubr.bf16.gmra.mxu0 %v103
    %v139 = vpop.f32.mrf.mxu0
    %v140 = vadd.f32 %v75, %v139
    %v141 = vpop.f32.mrf.mxu0
    %v142 = vpop.f32.mrf.mxu0
    %v143 = vpop.f32.mrf.mxu0
    %144 = vdwg.mxu0
    %v145 = vmax.f32 %v140, 0.0
    %v146 = vpack.c.bf16 %v145, %v145
    %v147 = vld [vmem:[#allocation6] sm:$0xf]
    %v148 = vld [vmem:[#allocation6 + $0x4] sm:$0xf]
    %v149 = vld [vmem:[#allocation6 + $0x8] sm:$0xf]
    %v150 = vld [vmem:[#allocation6 + $0xc] sm:$0xf]
    %v151 = vld [vmem:[#allocation6 + $0x10] sm:$0xf]
    %v152 = vld [vmem:[#allocation6 + $0x14] sm:$0xf]
    %v153 = vld [vmem:[#allocation6 + $0x18] sm:$0xf]
    %v154 = vld [vmem:[#allocation6 + $0x1c] sm:$0xf]
    %v155 = vld [vmem:[#allocation6 + $0x20] sm:$0xf]
    %v156 = vld [vmem:[#allocation6 + $0x24] sm:$0xf]
    %v157 = vld [vmem:[#allocation6 + $0x28] sm:$0xf]
    %v158 = vld [vmem:[#allocation6 + $0x2c] sm:$0xf]
    %v159 = vld [vmem:[#allocation6 + $0x30] sm:$0xf]
    %v160 = vld [vmem:[#allocation6 + $0x34] sm:$0xf]
    %v161 = vld [vmem:[#allocation6 + $0x38] sm:$0xf]
    %v162 = vld [vmem:[#allocation6 + $0x3c] sm:$0xf]
    %v163 = vld [vmem:[%s4] sm:$0x1]
    %v165 = vlaneseq
    %v166 = vshrl.u32 %v165, 7
    %v167 = vsub.s32 0, %v166
    %v168 = vrot.slane %v163, %v167
    %v186 = vunpack.c.l.b16 %v147
    %v187 = vunpack.c.l.b16 %v148
    %v188 = vunpack.c.l.b16 %v149
    %v189 = vunpack.c.l.b16 %v150
    %v190 = vunpack.c.l.b16 %v151
    %v191 = vunpack.c.l.b16 %v152
    %v192 = vunpack.c.l.b16 %v153
    %v193 = vunpack.c.l.b16 %v154
    %v194 = vunpack.c.l.b16 %v155
    %v195 = vunpack.c.l.b16 %v156
    %v196 = vunpack.c.l.b16 %v157
    %v197 = vunpack.c.l.b16 %v158
    %v198 = vunpack.c.l.b16 %v159
    %v199 = vunpack.c.l.b16 %v160
    %v200 = vunpack.c.l.b16 %v161
    %v201 = vunpack.c.l.b16 %v162
    %v202 = vpack.c.b16 %v187, %v186
    %v203 = vpack.c.b16 %v189, %v188
    %v204 = vpack.c.b16 %v191, %v190
    %v205 = vpack.c.b16 %v193, %v192
    %v206 = vpack.c.b16 %v195, %v194
    %v207 = vpack.c.b16 %v197, %v196
    %v208 = vpack.c.b16 %v199, %v198
    %v209 = vpack.c.b16 %v201, %v200
    %218 = vmatprep.subr.bf16.mxu0 0
    %219 = vmatpush1.bf16.msra.mxu0 %v209
    %220 = vmatprep.subr.bf16.mxu0 0
    %221 = vmatpush1.bf16.msra.mxu0 %v208
    %222 = vmatprep.subr.bf16.mxu0 0
    %223 = vmatpush1.bf16.msra.mxu0 %v207
    %224 = vmatprep.subr.bf16.mxu0 0
    %225 = vmatpush1.bf16.msra.mxu0 %v206
    %226 = vmatprep.subr.bf16.mxu0 0
    %227 = vmatpush1.bf16.msra.mxu0 %v205
    %228 = vmatprep.subr.bf16.mxu0 0
    %229 = vmatpush1.bf16.msra.mxu0 %v204
    %230 = vmatprep.subr.bf16.mxu0 0
    %231 = vmatpush1.bf16.msra.mxu0 %v203
    %232 = vmatprep.subr.bf16.mxu0 0
    %233 = vmatpush1.bf16.msra.mxu0 %v202
    %234 = vmatprep.subr.bf16.mxu0 0
    %235 = vmatpush2.bf16.msra.mxu0 0
    %236 = vmatprep.subr.bf16.mxu0 0
    %237 = vmatpush2.bf16.msra.mxu0 0
    %238 = vmatprep.subr.bf16.mxu0 0
    %239 = vmatpush2.bf16.msra.mxu0 0
    %240 = vmatprep.subr.bf16.mxu0 0
    %241 = vmatpush2.bf16.msra.mxu0 0
    %242 = vmatprep.subr.bf16.mxu0 0
    %243 = vmatpush2.bf16.msra.mxu0 0
    %244 = vmatprep.subr.bf16.mxu0 0
    %245 = vmatpush2.bf16.msra.mxu0 0
    %246 = vmatprep.subr.bf16.mxu0 0
    %247 = vmatpush2.bf16.msra.mxu0 0
    %248 = vmatprep.subr.bf16.mxu0 0
    %249 = vmatpush2.bf16.msra.mxu0 0
    %250 = vmatprep.mubr.bf16.mxu0 0
    %251 = vmatmul.mubr.bf16.gmra.mxu0 %v146
    %v252 = vpop.f32.mrf.mxu0
    %v253 = vadd.f32 %v168, %v252
    %v254 = vpop.f32.mrf.mxu0
    %v255 = vpop.f32.mrf.mxu0
    %v256 = vpop.f32.mrf.mxu0
    %257 = vdwg.mxu0
    %v258 = vpack.c.bf16 %v253, %v253
    %259 = vst [vmem:[%s5] sm:$0xf] %v258
    // Predicated region
    $region34: #{simple_nn_forward.1} parent=1 // pred_check
      _
    $region35: #{simple_nn_forward.1} parent=1 // pred_check_branch
      %261 = sbr.rel (0) target = $region37
    $region36: #{simple_nn_forward.1} parent=1 // pred_region
      _
    $region37: #{simple_nn_forward.1} parent=1 // pred_fallthru
      _
    // Predicated region
    $region38: #{simple_nn_forward.1} parent=1 // pred_check
      _
    $region39: #{simple_nn_forward.1} parent=1 // pred_check_branch
      %263 = sbr.rel (0) target = $region41
    $region40: #{simple_nn_forward.1} parent=1 // pred_region
      _
    $region41: #{simple_nn_forward.1} parent=1 // pred_fallthru
      _
    %264 = vsyncpa [#allocation3], 1
    %265 = vsyncpa [#allocation5], 1

</llo_original>
